<compile_context>
chip_gen: v6e
topology: v6e:2x2x1
jax: 0.10.0
libtpu: 0.0.40
codegen_flags: <defaults>
</compile_context>

<pallas_src>
import functools

import jax
import jax.numpy as jnp
from jax.experimental import pallas as pl
from jax.experimental.pallas import tpu as pltpu


# ---------------------------------------------------------------------------
# Kernel bodies
# ---------------------------------------------------------------------------
def _apply_threshold(u, m):
    # (|u| > m).float() * sign(u), fused as one compare + sign + select.
    return jnp.where(jnp.abs(u) > m, jnp.sign(u), jnp.float32(0.0))


def _accumulate_hinge(u, t, out_ref, acc_ref, *, m, n_rows, tn_rows, steps,
                      needs_mask):
    """hinge = clamp(m - u*t, 0); VPU-accumulate into scratch; reduce at end."""
    core = pl.program_id(0)
    step = pl.program_id(1)

    hinge = jnp.maximum(m - u * t, 0.0)                          # (TN, bit) f32
    if needs_mask:
        # Zero rows beyond the true batch (partial last block / clamped extra
        # blocks); `where` also kills any garbage NaN from the padded read.
        gb = core * steps + step                                 # global block
        row = gb * tn_rows + jax.lax.broadcasted_iota(jnp.int32, hinge.shape, 0)
        hinge = jnp.where(row < n_rows, hinge, 0.0)

    @pl.when(step == 0)
    def _():
        acc_ref[...] = jnp.zeros_like(acc_ref)
        out_ref[...] = jnp.zeros_like(out_ref)

    acc_ref[...] += hinge                                        # pure VPU adds

    @pl.when(step == pl.num_programs(1) - 1)
    def _():
        # Single cross-lane/sublane reduction per core, raw partial sum.
        out_ref[...] = jnp.sum(acc_ref[...], keepdims=True)


def _dpn_single_label_kernel(lbl_ref, u_ref, tv_ref, out_ref, acc_ref, *,
                             m, threshold_T, n_rows, tn_rows, steps, needs_mask):
    u = u_ref[...].astype(jnp.float32)                           # (TN, bit)
    if threshold_T:
        u = _apply_threshold(u, m)
    lbl = lbl_ref[...]                                           # (TN, 1) int32
    tn, c = lbl.shape[0], tv_ref.shape[0]
    # hash_center = target_vectors[label]: one-hot gather on the MXU with
    # bf16 operands ({0,1} x {-1,+1} are exact) and f32 accumulation.
    col = jax.lax.broadcasted_iota(jnp.int32, (tn, c), 1)
    onehot = (col == lbl).astype(jnp.bfloat16)                   # (TN, C)
    tv = tv_ref[...].astype(jnp.bfloat16)                        # (C, bit)
    t = jnp.dot(onehot, tv, preferred_element_type=jnp.float32)  # (TN, bit)
    _accumulate_hinge(u, t, out_ref, acc_ref, m=m, n_rows=n_rows,
                      tn_rows=tn_rows, steps=steps, needs_mask=needs_mask)


def _dpn_multi_label_kernel(y_ref, u_ref, tv_ref, rc_ref, out_ref, acc_ref, *,
                            m, threshold_T, n_rows, tn_rows, steps, needs_mask):
    u = u_ref[...].astype(jnp.float32)                           # (TN, bit)
    if threshold_T:
        u = _apply_threshold(u, m)
    y = y_ref[...].astype(jnp.bfloat16)                          # (TN, C) {0,1}
    tv = tv_ref[...].astype(jnp.bfloat16)                        # (C, bit) {±1}
    cs = jnp.dot(y, tv, preferred_element_type=jnp.float32)      # exact ints
    rc = rc_ref[...].astype(jnp.float32)                         # (1, bit)
    # center_sum[center_sum == 0] = random_center (broadcast inside the select)
    cs = jnp.where(cs == 0.0, rc, cs)
    t = jnp.where(cs > 0.0, 1.0, -1.0)                           # ±1, f32
    _accumulate_hinge(u, t, out_ref, acc_ref, m=m, n_rows=n_rows,
                      tn_rows=tn_rows, steps=steps, needs_mask=needs_mask)


# ---------------------------------------------------------------------------
# Wrapper
# ---------------------------------------------------------------------------
_ROW_TILE_CAP = 8192                 # per-step u DMA >> ~0.35 us step overhead
_DEFAULT_VMEM_BUDGET = 20 << 20      # conservative per-core tile budget
_VMEM_LIMIT_BYTES = 32 << 20         # <= per-TC VMEM on v5e/v6e/v7x


def _pick_row_tile(n_rows, bit, n_class, u_itemsize, y_itemsize, single_label,
                   requested, budget_bytes):
    n8 = max(8, ((n_rows + 7) // 8) * 8)
    if requested is not None:
        tn = int(requested)
    else:
        # Per-row VMEM bytes that scale with tn: double-buffered native-dtype u,
        # the f32 hinge accumulator + ~3 f32 temporaries (u_f32 / t / hinge),
        # and the double-buffered label / y tile.
        per_row = 2 * bit * u_itemsize + 4 * bit * 4
        per_row += (2 * 4) if single_label else (2 * n_class * y_itemsize)
        fixed = 2 * n_class * bit * 4 + 2 * bit * 4 + (64 << 10)  # tv, rc, slack
        tn = max(8, (budget_bytes - fixed) // per_row)
        tn = min(tn, _ROW_TILE_CAP)
    tn = max(8, (tn // 8) * 8)                                   # sublane multiple
    return min(tn, n8)


def dpn_polarization_loss(u, y, target_vectors, random_center, m, *,
                          single_label=True, threshold_T=False, labels=None,
                          tn_rows=None, n_shards=2,
                          vmem_budget_bytes=_DEFAULT_VMEM_BUDGET):
    """Pallas implementation of DPNLoss.forward (loss value only)."""
    n, bit = u.shape
    c = target_vectors.shape[0]

    y_itemsize = 4 if y is None else jnp.dtype(y.dtype).itemsize
    tn = _pick_row_tile(n, bit, c, jnp.dtype(u.dtype).itemsize, y_itemsize,
                        single_label, tn_rows, vmem_budget_bytes)

    total_blocks = pl.cdiv(n, tn)
    n_shards = max(1, int(n_shards))
    steps = pl.cdiv(total_blocks, n_shards)
    needs_mask = (n_shards * steps * tn != n)
    inv_count = 1.0 / float(n * bit)

    def row_block(ci, si):
        # Clamp blocks past the end of the batch onto a valid block; the
        # in-kernel row mask zeroes their contribution.
        return (jnp.minimum(ci * steps + si, total_blocks - 1), 0)

    # One resident (1,1) accumulator row per core (leading dim squeezed so the
    # last-two block dims equal the full array dims); wrapper sums the partials.
    out_spec = pl.BlockSpec((None, 1, 1), lambda ci, si: (ci, 0, 0))
    out_shape = jax.ShapeDtypeStruct((n_shards, 1, 1), jnp.float32)
    scratch_shapes = [pltpu.VMEM((tn, bit), jnp.float32)]
    compiler_params = pltpu.CompilerParams(
        dimension_semantics=("parallel", "arbitrary"),
        vmem_limit_bytes=_VMEM_LIMIT_BYTES)

    common = dict(m=float(m), threshold_T=bool(threshold_T),
                  n_rows=n, tn_rows=tn, steps=steps, needs_mask=needs_mask)

    if single_label:
        if labels is None:
            # One-hot y: only needed to recover the integer labels once.
            labels = jnp.argmax(y, axis=1)
        labels = labels.astype(jnp.int32).reshape(n, 1)
        kernel = functools.partial(_dpn_single_label_kernel, **common)
        out = pl.pallas_call(
            kernel,
            grid=(n_shards, steps),
            in_specs=[
                pl.BlockSpec((tn, 1), row_block),                # labels
                pl.BlockSpec((tn, bit), row_block),              # u (native dtype)
                pl.BlockSpec((c, bit), lambda ci, si: (0, 0)),   # target_vectors
            ],
            out_specs=out_spec,
            out_shape=out_shape,
            scratch_shapes=scratch_shapes,
            compiler_params=compiler_params,
        )(labels, u, target_vectors)
    else:
        kernel = functools.partial(_dpn_multi_label_kernel, **common)
        out = pl.pallas_call(
            kernel,
            grid=(n_shards, steps),
            in_specs=[
                pl.BlockSpec((tn, c), row_block),                # y (native dtype)
                pl.BlockSpec((tn, bit), row_block),              # u (native dtype)
                pl.BlockSpec((c, bit), lambda ci, si: (0, 0)),   # target_vectors
                pl.BlockSpec((1, bit), lambda ci, si: (0, 0)),   # random_center
            ],
            out_specs=out_spec,
            out_shape=out_shape,
            scratch_shapes=scratch_shapes,
            compiler_params=compiler_params,
        )(y, u, target_vectors, random_center)

    # Per-core raw partial sums -> mean over the TRUE element count.
    return jnp.sum(out) * inv_count


@functools.partial(jax.jit,
                   static_argnames=("m", "single_label", "threshold_T"),
                   donate_argnums=(3, 4))
def dpn_forward(u, y, ind, U, Y, target_vectors, random_center, m,
                single_label=True, threshold_T=False):
    """Full forward: U/Y bookkeeping (donated, in-place) + Pallas loss kernel."""
    # TODO(synk): fold the U/Y row scatter into the kernel via scalar-prefetched
    # `ind` + input_output_aliases; for now it is a functional scatter on
    # donated buffers, which XLA updates in place.
    new_U = U.at[ind, :].set(u.astype(U.dtype))
    new_Y = Y.at[ind, :].set(y.astype(Y.dtype))
    loss = dpn_polarization_loss(u, y, target_vectors, random_center, m,
                                 single_label=single_label,
                                 threshold_T=threshold_T)
    return loss, new_U, new_Y


# ---------------------------------------------------------------------------
# Deterministic parameter construction (mirrors DPNLoss.__init__ shapes).
# ---------------------------------------------------------------------------
def get_target_vectors(key, n_class, bit, p=0.5):
    rows = []
    n_neg = int(bit * p)
    for cls in range(n_class):
        k = jax.random.fold_in(key, cls)
        perm = jax.random.permutation(k, bit)
        row = jnp.ones((bit,), jnp.float32).at[perm[:n_neg]].set(-1.0)
        rows.append(row)
    return jnp.stack(rows)               # (n_class, bit), entries in {-1, +1}


def _reference_loss(u, y, tv, rc, m, single_label, threshold_T):
    u = u.astype(jnp.float32)
    y = y.astype(jnp.float32)
    if threshold_T:
        u = (jnp.abs(u) > m).astype(jnp.float32) * jnp.sign(u)
    if single_label:
        t = tv[jnp.argmax(y, axis=1)]
    else:
        cs = y @ tv
        cs = jnp.where(cs == 0.0, jnp.broadcast_to(rc, cs.shape), cs)
        t = 2.0 * (cs > 0.0).astype(jnp.float32) - 1.0
    return jnp.mean(jnp.maximum(m - u * t, 0.0))


if __name__ == "__main__":
    # Config consistent with the module: n_class=16, bit=32, p=0.5, m=0.1.
    n_class, bit, p, m = 16, 32, 0.5, 0.1
    num_train = 64

    key = jax.random.PRNGKey(0)
    k_tv, k_rc, k1, k2, k3, k_ind = jax.random.split(key, 6)

    target_vectors = get_target_vectors(k_tv, n_class, bit, p)       # (C, bit)
    # torch.randint(2, (bit,)) -> values in {0, 1}, matching the module.
    random_center = jax.random.randint(k_rc, (1, bit), 0, 2).astype(jnp.float32)

    # --- Test 1: single-label, full forward with U/Y bookkeeping -------------
    N1 = 8
    u1 = jax.random.normal(k1, (N1, bit), dtype=jnp.float32)
    labels1 = jax.random.randint(jax.random.fold_in(k1, 1), (N1,), 0, n_class)
    y1 = jax.nn.one_hot(labels1, n_class, dtype=jnp.float32)
    ind1 = jax.random.permutation(k_ind, num_train)[:N1]
    U = jnp.zeros((num_train, bit), jnp.float32)
    Y = jnp.zeros((num_train, n_class), jnp.float32)

    loss1, new_U, new_Y = dpn_forward(u1, y1, ind1, U, Y, target_vectors,
                                      random_center, m=m,
                                      single_label=True, threshold_T=False)
    jax.block_until_ready((loss1, new_U, new_Y))
    ref1 = _reference_loss(u1, y1, target_vectors, random_center, m, True, False)
    assert jnp.allclose(loss1, ref1, atol=1e-5), (loss1, ref1)
    assert jnp.allclose(new_U[ind1], u1), "U bookkeeping mismatch"
    assert jnp.allclose(new_Y[ind1], y1), "Y bookkeeping mismatch"

    # --- Test 2: single-label, int labels passed directly, multi-step grid
    #             (2x2 core/step grid) + threshold_T --------------------------
    N2 = 48
    u2 = jax.random.normal(k2, (N2, bit), dtype=jnp.float32)
    labels2 = jax.random.randint(jax.random.fold_in(k2, 1), (N2,), 0, n_class)
    loss2 = dpn_polarization_loss(u2, None, target_vectors, random_center, m,
                                  single_label=True, threshold_T=True,
                                  labels=labels2, tn_rows=16)    # grid = (2, 2)
    loss2 = jax.block_until_ready(loss2)
    y2 = jax.nn.one_hot(labels2, n_class, dtype=jnp.float32)
    ref2 = _reference_loss(u2, y2, target_vectors, random_center, m, True, True)
    assert jnp.allclose(loss2, ref2, atol=1e-5), (loss2, ref2)

    # --- Test 3: multi-label, N not a multiple of 8 (partial block + mask) ---
    N3 = 20
    u3 = jax.random.normal(k3, (N3, bit), dtype=jnp.float32)
    y3 = (jax.random.uniform(jax.random.fold_in(k3, 1), (N3, n_class)) < 0.3
          ).astype(jnp.float32)
    y3 = y3.at[0].set(0.0)   # force the random-center substitution path
    loss3 = dpn_polarization_loss(u3, y3, target_vectors, random_center, m,
                                  single_label=False, threshold_T=False)
    loss3 = jax.block_until_ready(loss3)
    ref3 = _reference_loss(u3, y3, target_vectors, random_center, m, False, False)
    assert jnp.allclose(loss3, ref3, atol=1e-5), (loss3, ref3)

    print("KERNEL_OK")
</pallas_src>

<mosaic_0001>
module attributes {stable_mosaic.version = 11 : i64} {
  func.func @_dpn_single_label_kernel(%arg0: i32, %arg1: i32, %arg2: memref<8x1xi32, #tpu.memory_space<vmem>>, %arg3: memref<8x32xf32, #tpu.memory_space<vmem>>, %arg4: memref<16x32xf32, #tpu.memory_space<vmem>>, %arg5: memref<1x1x1xf32, #tpu.memory_space<vmem>>, %arg6: memref<8x32xf32, #tpu.memory_space<vmem>>) attributes {dimension_semantics = [#tpu.dimension_semantics<parallel>, #tpu.dimension_semantics<arbitrary>], iteration_bounds = array<i64: 2, 1>, scalar_prefetch = 0 : i64, scratch_operands = 1 : i64, tpu.core_type = #tpu.core_type<tc>, window_params = [{transform_indices = @transform_0, window_bounds = array<i64: 8, 1>}, {transform_indices = @transform_1, window_bounds = array<i64: 8, 32>}, {pipeline_mode = #tpu.pipeline_mode<synchronous>, transform_indices = @transform_2, window_bounds = array<i64: 16, 32>}, {transform_indices = @transform_3, window_bounds = array<i64: 1, 1, 1>}]} {
    %c0 = arith.constant 0 : index
    %c0_0 = arith.constant 0 : index
    %0 = vector.load %arg3[%c0, %c0_0] : memref<8x32xf32, #tpu.memory_space<vmem>>, vector<8x32xf32>
    %c0_1 = arith.constant 0 : index
    %c0_2 = arith.constant 0 : index
    %1 = vector.load %arg2[%c0_1, %c0_2] : memref<8x1xi32, #tpu.memory_space<vmem>>, vector<8x1xi32>
    %2 = tpu.iota {dimensions = array<i32: 1>} : vector<8x16xi32>
    %3 = vector.broadcast %1 : vector<8x1xi32> to vector<8x16xi32>
    %4 = arith.cmpi eq, %2, %3 : vector<8x16xi32>
    %5 = arith.extui %4 : vector<8x16xi1> to vector<8x16xi32>
    %6 = arith.sitofp %5 : vector<8x16xi32> to vector<8x16xf32>
    %7 = arith.truncf %6 : vector<8x16xf32> to vector<8x16xbf16>
    %c0_3 = arith.constant 0 : index
    %c0_4 = arith.constant 0 : index
    %8 = vector.load %arg4[%c0_3, %c0_4] : memref<16x32xf32, #tpu.memory_space<vmem>>, vector<16x32xf32>
    %9 = arith.truncf %8 : vector<16x32xf32> to vector<16x32xbf16>
    %cst = arith.constant dense<0.000000e+00> : vector<8x32xf32>
    %10 = tpu.matmul %7, %9, %cst {dimension_numbers = #tpu.dot_dimension_numbers<[1], [0], [0], [1], [0, 0, 1, 1], [], []>} : vector<8x16xbf16>, vector<16x32xbf16>, vector<8x32xf32> -> vector<8x32xf32>
    %11 = arith.mulf %0, %10 : vector<8x32xf32>
    %cst_5 = arith.constant 1.000000e-01 : f32
    %12 = vector.broadcast %cst_5 : f32 to vector<8x32xf32>
    %13 = arith.subf %12, %11 : vector<8x32xf32>
    %cst_6 = arith.constant 0.000000e+00 : f32
    %14 = vector.broadcast %cst_6 : f32 to vector<8x32xf32>
    %15 = arith.maximumf %13, %14 : vector<8x32xf32>
    %c1_i32 = arith.constant 1 : i32
    %16 = arith.muli %arg0, %c1_i32 : i32
    %17 = arith.addi %16, %arg1 : i32
    %c8_i32 = arith.constant 8 : i32
    %18 = arith.muli %17, %c8_i32 : i32
    %19 = tpu.iota {dimensions = array<i32: 0>} : vector<8x32xi32>
    %20 = vector.broadcast %18 : i32 to vector<8x32xi32>
    %21 = arith.addi %20, %19 : vector<8x32xi32>
    %c8_i32_7 = arith.constant 8 : i32
    %22 = vector.broadcast %c8_i32_7 : i32 to vector<8x32xi32>
    %23 = arith.cmpi slt, %21, %22 : vector<8x32xi32>
    %cst_8 = arith.constant 0.000000e+00 : f32
    %24 = vector.broadcast %cst_8 : f32 to vector<8x32xf32>
    %25 = arith.select %23, %15, %24 : vector<8x32xi1>, vector<8x32xf32>
    %c0_i32 = arith.constant 0 : i32
    %26 = arith.cmpi eq, %arg1, %c0_i32 : i32
    %27 = arith.extui %26 : i1 to i32
    %c0_i32_9 = arith.constant 0 : i32
    %28 = arith.cmpi ne, %27, %c0_i32_9 : i32
    scf.if %28 {
      %cst_16 = arith.constant 0.000000e+00 : f32
      %35 = vector.broadcast %cst_16 : f32 to vector<8x32xf32>
      %c0_17 = arith.constant 0 : index
      %c0_18 = arith.constant 0 : index
      %36 = vector.load %arg6[%c0_17, %c0_18] : memref<8x32xf32, #tpu.memory_space<vmem>>, vector<8x32xf32>
      tpu.vector_store %arg6[%c0_17, %c0_18], %35 {strides = array<i32>} : memref<8x32xf32, #tpu.memory_space<vmem>>, vector<8x32xf32>,
      %cst_19 = arith.constant 0.000000e+00 : f32
      %37 = vector.broadcast %cst_19 : f32 to vector<1x1xf32>
      %c0_20 = arith.constant 0 : index
      %c0_21 = arith.constant 0 : index
      %c0_22 = arith.constant 0 : index
      %38 = vector.load %arg5[%c0_20, %c0_21, %c0_22] : memref<1x1x1xf32, #tpu.memory_space<vmem>>, vector<1x1x1xf32>
      %39 = vector.shape_cast %38 : vector<1x1x1xf32> to vector<1x1xf32>
      %40 = vector.shape_cast %37 : vector<1x1xf32> to vector<1x1x1xf32>
      tpu.vector_store %arg5[%c0_20, %c0_21, %c0_22], %40 {strides = array<i32>} : memref<1x1x1xf32, #tpu.memory_space<vmem>>, vector<1x1x1xf32>,
    } else {
    }
    %c0_10 = arith.constant 0 : index
    %c0_11 = arith.constant 0 : index
    %29 = vector.load %arg6[%c0_10, %c0_11] : memref<8x32xf32, #tpu.memory_space<vmem>>, vector<8x32xf32>
    %30 = arith.addf %29, %25 : vector<8x32xf32>
    %c0_12 = arith.constant 0 : index
    %c0_13 = arith.constant 0 : index
    %31 = vector.load %arg6[%c0_12, %c0_13] : memref<8x32xf32, #tpu.memory_space<vmem>>, vector<8x32xf32>
    tpu.vector_store %arg6[%c0_12, %c0_13], %30 {strides = array<i32>} : memref<8x32xf32, #tpu.memory_space<vmem>>, vector<8x32xf32>,
    %c0_i32_14 = arith.constant 0 : i32
    %32 = arith.cmpi eq, %arg1, %c0_i32_14 : i32
    %33 = arith.extui %32 : i1 to i32
    %c0_i32_15 = arith.constant 0 : i32
    %34 = arith.cmpi ne, %33, %c0_i32_15 : i32
    scf.if %34 {
      %c0_16 = arith.constant 0 : index
      %c0_17 = arith.constant 0 : index
      %35 = vector.load %arg6[%c0_16, %c0_17] : memref<8x32xf32, #tpu.memory_space<vmem>>, vector<8x32xf32>
      %36 = vector.shape_cast %35 : vector<8x32xf32> to vector<1x8x32xf32>
      %cst_18 = arith.constant dense<0.000000e+00> : vector<1xf32>
      %37 = vector.multi_reduction <add>, %36, %cst_18 [1, 2] : vector<1x8x32xf32> to vector<1xf32>
      %38 = vector.shape_cast %37 : vector<1xf32> to vector<1x1x1xf32>
      %39 = vector.extract %38[0, 0, 0] : f32 from vector<1x1x1xf32>
      %40 = vector.broadcast %39 : f32 to vector<1x1xf32>
      %c0_19 = arith.constant 0 : index
      %c0_20 = arith.constant 0 : index
      %c0_21 = arith.constant 0 : index
      %41 = vector.load %arg5[%c0_19, %c0_20, %c0_21] : memref<1x1x1xf32, #tpu.memory_space<vmem>>, vector<1x1x1xf32>
      %42 = vector.shape_cast %41 : vector<1x1x1xf32> to vector<1x1xf32>
      %43 = vector.shape_cast %40 : vector<1x1xf32> to vector<1x1x1xf32>
      tpu.vector_store %arg5[%c0_19, %c0_20, %c0_21], %43 {strides = array<i32>} : memref<1x1x1xf32, #tpu.memory_space<vmem>>, vector<1x1x1xf32>,
    } else {
    }
    return
  }
  func.func @transform_0(%arg0: i32, %arg1: i32) -> (i32, i32) {
    %c1_i32 = arith.constant 1 : i32
    %0 = arith.muli %arg0, %c1_i32 : i32
    %1 = arith.addi %0, %arg1 : i32
    %c0_i32 = arith.constant 0 : i32
    %2 = arith.minsi %1, %c0_i32 : i32
    %c0_i32_0 = arith.constant 0 : i32
    %c0_i32_1 = arith.constant 0 : i32
    return %2, %c0_i32_0 : i32, i32
  }
  func.func @transform_1(%arg0: i32, %arg1: i32) -> (i32, i32) {
    %c1_i32 = arith.constant 1 : i32
    %0 = arith.muli %arg0, %c1_i32 : i32
    %1 = arith.addi %0, %arg1 : i32
    %c0_i32 = arith.constant 0 : i32
    %2 = arith.minsi %1, %c0_i32 : i32
    %c0_i32_0 = arith.constant 0 : i32
    %c0_i32_1 = arith.constant 0 : i32
    return %2, %c0_i32_0 : i32, i32
  }
  func.func @transform_2(%arg0: i32, %arg1: i32) -> (i32, i32) {
    %c0_i32 = arith.constant 0 : i32
    %c0_i32_0 = arith.constant 0 : i32
    %c0_i32_1 = arith.constant 0 : i32
    return %c0_i32, %c0_i32_0 : i32, i32
  }
  func.func @transform_3(%arg0: i32, %arg1: i32) -> (i32, i32, i32) {
    %c0_i32 = arith.constant 0 : i32
    %c0_i32_0 = arith.constant 0 : i32
    %c0_i32_1 = arith.constant 0 : i32
    return %arg0, %c0_i32, %c0_i32_0 : i32, i32, i32
  }
}

</mosaic_0001>

<llo_original>
// kernel: dpn_forward.1
$region0: #{dpn_forward.1}
  #allocation0 [shape = 'u32[]', space=smem, size = 0x4, offset = 0x4, fixed_abs, tag = 'smem constant byte address 0x4 - core index']
  #allocation1 [shape = 'u32[144,128]{1,0:T(1,128)}', space=vmem, size = 0x12000, scoped, tag = 'internal scratch']
  #allocation2 [shape = 'f32[8,32]{1,0:T(8,128)}', space=vmem, size = 0x1000, scoped, tag = 'scratch operand']
  %s0 = inlined_call_operand.vmem [shape: s32[8,1], index: 0, kind: input, shape index: {}]
  %s1 = inlined_call_operand.vmem [shape: f32[8,32], index: 1, kind: input, shape index: {}]
  %s2 = inlined_call_operand.vmem [shape: f32[16,32], index: 2, kind: input, shape index: {}]
  %s3 = inlined_call_operand.vmem [shape: f32[2,1,1], index: 3, kind: output, shape index: {}]
  %s4 = sld [smem:[#allocation0]]
  $region53: #{dpn_forward.1} parent=0
    _
  %s6 = ssub.s32 1, %s4
  %s7 = scalar_select 0, %s6, %s4
  loop: start=0, step=1, limit=4
  $region2: #{dpn_forward.1} parent=0 // loop_pre_header
    _
  $region3: #{dpn_forward.1} parent=0 // loop_header
    %s9 = sphi 0, %s13
    %p10 = scmp.ge.s32.totalorder %s9, 4
    %s16 = sphi 0, %s28
    %s17 = sphi 0, %s24
    %s18 = sphi 0, %s16
    %s19 = sphi 0, %s17
    %s20 = sphi 0, %s18
    %s21 = sphi 0, %s19
    %s37 = sphi 0, %s39
    %s40 = sphi 0, %s37
    %s41 = sphi 0, %s40
    %s57 = sphi 0, %s41
    %s69 = sphi 0, %s71
    %s72 = sphi 0, %s69
    %s73 = sphi 0, %s72
    %s89 = sphi 0, %s73
    %s93 = sphi 0, %s93
    %s95 = sphi 0, %s93
    %s96 = sphi 0, %s95
    %s110 = sphi 0, %s96
    %s116 = sphi 0, %s118
    %s119 = sphi 0, %s116
    %s120 = sphi 0, %s119
    %s136 = sphi 0, %s120
  $region4: #{dpn_forward.1} parent=0 // loop_header_branch
    %12 = sbr.rel (%p10) target = $region8
  $region5: #{dpn_forward.1} parent=0 // loop_body
    %s14 = ssub.s32 %s9, 1
    %s15 = ssub.s32 %s9, 2
    %s22 = sadd.s32 1, %s17
    %p23 = scmp.ge.s32.totalorder %s22, 1
    %s24 = scalar_select %p23, 0, %s22
    %s25 = sadd.s32 1, %s16
    %s26 = scalar_select %p23, %s25, %s16
    %p27 = scmp.ge.s32.totalorder %s26, 2
    %s28 = scalar_select %p27, 0, %s26
    %s29 = sadd.s32 %s16, %s17
    %p30 = scmp.lt.s32.totalorder %s29, 0
    %s31 = scalar_select %p30, %s29, 0
    %s32 = sadd.s32 %s28, %s24
    %p33 = scmp.lt.s32.totalorder %s32, 0
    %s34 = scalar_select %p33, %s32, 0
    %s35 = ssub.s32 %s31, %s34
    %p36 = scmp.eq.s32.totalorder %s35, 0
    %s38 = sadd.s32 %s37, 1
    %s39 = scalar_select %p36, %s37, %s38
    %p42 = pneg %p36
    %p43 = scmp.eq.s32.totalorder %s9, 1
    %p44 = por %p42, %p43
    %p45 = scmp.ne.s32.totalorder %s37, %s40
    %p46 = scmp.eq.s32.totalorder %s9, 0
    %p47 = por %p45, %p46
    %p48 = scmp.ne.s32.totalorder %s37, %s40
    %p49 = scmp.eq.s32.totalorder %s14, 1
    %p50 = por %p48, %p49
    %p51 = scmp.ne.s32.totalorder %s40, %s41
    %p52 = scmp.eq.s32.totalorder %s14, 0
    %p53 = por %p51, %p52
    %p54 = scmp.ne.s32.totalorder %s40, %s41
    %p55 = scmp.eq.s32.totalorder %s15, 1
    %p56 = por %p54, %p55
    %p58 = scmp.ne.s32.totalorder %s41, %s57
    %p59 = scmp.eq.s32.totalorder %s15, 0
    %p60 = por %p58, %p59
    %s61 = sadd.s32 %s16, %s17
    %p62 = scmp.lt.s32.totalorder %s61, 0
    %s63 = scalar_select %p62, %s61, 0
    %s64 = sadd.s32 %s28, %s24
    %p65 = scmp.lt.s32.totalorder %s64, 0
    %s66 = scalar_select %p65, %s64, 0
    %s67 = ssub.s32 %s63, %s66
    %p68 = scmp.eq.s32.totalorder %s67, 0
    %s70 = sadd.s32 %s69, 1
    %s71 = scalar_select %p68, %s69, %s70
    %p74 = pneg %p68
    %p75 = scmp.eq.s32.totalorder %s9, 1
    %p76 = por %p74, %p75
    %p77 = scmp.ne.s32.totalorder %s69, %s72
    %p78 = scmp.eq.s32.totalorder %s9, 0
    %p79 = por %p77, %p78
    %p80 = scmp.ne.s32.totalorder %s69, %s72
    %p81 = scmp.eq.s32.totalorder %s14, 1
    %p82 = por %p80, %p81
    %p83 = scmp.ne.s32.totalorder %s72, %s73
    %p84 = scmp.eq.s32.totalorder %s14, 0
    %p85 = por %p83, %p84
    %p86 = scmp.ne.s32.totalorder %s72, %s73
    %p87 = scmp.eq.s32.totalorder %s15, 1
    %p88 = por %p86, %p87
    %p90 = scmp.ne.s32.totalorder %s73, %s89
    %p91 = scmp.eq.s32.totalorder %s15, 0
    %p92 = por %p90, %p91
    %s94 = sadd.s32 %s93, 1
    %p97 = scmp.eq.s32.totalorder %s9, 1
    %p98 = scmp.ne.s32.totalorder %s93, %s95
    %p99 = scmp.eq.s32.totalorder %s9, 0
    %p100 = por %p98, %p99
    %p101 = scmp.ne.s32.totalorder %s93, %s95
    %p102 = scmp.eq.s32.totalorder %s14, 1
    %p103 = por %p101, %p102
    %p104 = scmp.ne.s32.totalorder %s95, %s96
    %p105 = scmp.eq.s32.totalorder %s14, 0
    %p106 = por %p104, %p105
    %p107 = scmp.ne.s32.totalorder %s95, %s96
    %p108 = scmp.eq.s32.totalorder %s15, 1
    %p109 = por %p107, %p108
    %p111 = scmp.ne.s32.totalorder %s96, %s110
    %p112 = scmp.eq.s32.totalorder %s15, 0
    %p113 = por %p111, %p112
    %s114 = ssub.s32 %s16, %s28
    %p115 = scmp.eq.s32.totalorder %s114, 0
    %s117 = sadd.s32 %s116, 1
    %s118 = scalar_select %p115, %s116, %s117
    %p121 = pneg %p115
    %p122 = scmp.eq.s32.totalorder %s9, 1
    %p123 = por %p121, %p122
    %p124 = scmp.ne.s32.totalorder %s116, %s119
    %p125 = scmp.eq.s32.totalorder %s9, 0
    %p126 = por %p124, %p125
    %p127 = scmp.ne.s32.totalorder %s116, %s119
    %p128 = scmp.eq.s32.totalorder %s14, 1
    %p129 = por %p127, %p128
    %p130 = scmp.ne.s32.totalorder %s119, %s120
    %p131 = scmp.eq.s32.totalorder %s14, 0
    %p132 = por %p130, %p131
    %p133 = scmp.ne.s32.totalorder %s119, %s120
    %p134 = scmp.eq.s32.totalorder %s15, 1
    %p135 = por %p133, %p134
    %p137 = scmp.ne.s32.totalorder %s120, %s136
    %p138 = scmp.eq.s32.totalorder %s15, 0
    %p139 = por %p137, %p138
    %p140 = scmp.le.s32.totalorder 1, %s9
    %p141 = scmp.lt.s32.totalorder %s9, 3
    %p142 = pnand %p140, %p141
    %p143 = pneg %p142
    // Predicated region
    $region9: #{dpn_forward.1} parent=5 // pred_check
      _
    $region10: #{dpn_forward.1} parent=5 // pred_check_branch
      %145 = sbr.rel (%p142) target = $region12
    $region11: #{dpn_forward.1} parent=5 // pred_region
      %s146 = ssub.s32 %s9, 1
      // Predicated region
      $region13: #{dpn_forward.1} parent=11 // pred_check
        %p147 = pneg %p106
      $region14: #{dpn_forward.1} parent=11 // pred_check_branch
        %149 = sbr.rel (%p147) target = $region16
      $region15: #{dpn_forward.1} parent=11 // pred_region
        _
      $region16: #{dpn_forward.1} parent=11 // pred_fallthru
        _
    $region12: #{dpn_forward.1} parent=5 // pred_fallthru
      _
    %p150 = scmp.lt.s32.totalorder %s9, 2
    // Predicated region
    $region17: #{dpn_forward.1} parent=5 // pred_check
      %p151 = pneg %p150
    $region18: #{dpn_forward.1} parent=5 // pred_check_branch
      %153 = sbr.rel (%p151) target = $region20
    $region19: #{dpn_forward.1} parent=5 // pred_region
      // Predicated region
      $region21: #{dpn_forward.1} parent=19 // pred_check
        %p154 = pneg %p47
      $region22: #{dpn_forward.1} parent=19 // pred_check_branch
        %156 = sbr.rel (%p154) target = $region24
      $region23: #{dpn_forward.1} parent=19 // pred_region
        %s157 = sadd.s32 %s16, %s17
        %p158 = scmp.lt.s32.totalorder %s157, 0
        %s159 = scalar_select %p158, %s157, 0
        %p160 = scmp.lt.s32.totalorder %s159, 0
        %s161 = scalar_select %p160, %s159, 0
        %s162 = smul.addr %s161, 8
        %s163 = scalar_lea.vmem %s0, %s162
        %s164 = sadd.s32 %s16, %s17
        %p165 = scmp.lt.s32.totalorder %s164, 0
        %s166 = scalar_select %p165, %s164, 0
      $region24: #{dpn_forward.1} parent=19 // pred_fallthru
        _
      // Predicated region
      $region25: #{dpn_forward.1} parent=19 // pred_check
        %p167 = pneg %p79
      $region26: #{dpn_forward.1} parent=19 // pred_check_branch
        %169 = sbr.rel (%p167) target = $region28
      $region27: #{dpn_forward.1} parent=19 // pred_region
        %s170 = sadd.s32 %s16, %s17
        %p171 = scmp.lt.s32.totalorder %s170, 0
        %s172 = scalar_select %p171, %s170, 0
        %p173 = scmp.lt.s32.totalorder %s172, 0
        %s174 = scalar_select %p173, %s172, 0
        %s175 = smul.addr %s174, 8
        %s176 = scalar_lea.vmem %s1, %s175
        %s177 = sadd.s32 %s16, %s17
        %p178 = scmp.lt.s32.totalorder %s177, 0
        %s179 = scalar_select %p178, %s177, 0
      $region28: #{dpn_forward.1} parent=19 // pred_fallthru
        _
    $region20: #{dpn_forward.1} parent=5 // pred_fallthru
      _
    %p180 = scmp.le.s32.totalorder 1, %s9
    %p181 = scmp.lt.s32.totalorder %s9, 3
    %p182 = pnand %p180, %p181
    %p183 = pneg %p182
    // Predicated region
    $region29: #{dpn_forward.1} parent=5 // pred_check
      _
    $region30: #{dpn_forward.1} parent=5 // pred_check_branch
      %185 = sbr.rel (%p182) target = $region32
    $region31: #{dpn_forward.1} parent=5 // pred_region
      %s186 = ssub.s32 %s9, 1
      %s187 = sadd.s32 %s18, %s19
      %p188 = scmp.lt.s32.totalorder %s187, 0
      %s189 = scalar_select %p188, %s187, 0
      %p190 = scmp.lt.s32.totalorder %s189, 0
      %s191 = scalar_select %p190, %s189, 0
      %s192 = smul.addr %s191, 8
      %s193 = scalar_lea.vmem %s0, %s192
      %p194 = pneg %p53
      %p195 = pneg %p50
      %s196 = sadd.s32 %s18, %s19
      %p197 = scmp.lt.s32.totalorder %s196, 0
      %s198 = scalar_select %p197, %s196, 0
      %p199 = scmp.lt.s32.totalorder %s198, 0
      %s200 = scalar_select %p199, %s198, 0
      %s201 = smul.addr %s200, 8
      %s202 = scalar_lea.vmem %s1, %s201
      %p203 = pneg %p85
      %p204 = pneg %p82
      %p205 = pneg %p106
      %p206 = pneg %p103
      %p207 = pneg %p132
      %p208 = pneg %p129
      %p209 = scmp.lt.s32.totalorder %s18, 1
      %s210 = scalar_select %p209, %s18, 1
      %s211 = scalar_lea.vmem %s3, %s210
      %s212 = sadd.s32 %s18, %s19
      %p213 = scmp.lt.s32.totalorder %s212, 0
      %s214 = scalar_select %p213, %s212, 0
      %p215 = scmp.lt.s32.totalorder %s214, 0
      %s216 = scalar_select %p215, %s214, 0
      %s217 = smul.addr %s216, 8
      %s218 = scalar_lea.vmem %s0, %s217
      %s219 = sadd.s32 %s18, %s19
      %p220 = scmp.lt.s32.totalorder %s219, 0
      %s221 = scalar_select %p220, %s219, 0
      %s222 = sadd.s32 %s18, %s19
      %p223 = scmp.lt.s32.totalorder %s222, 0
      %s224 = scalar_select %p223, %s222, 0
      %p225 = scmp.lt.s32.totalorder %s224, 0
      %s226 = scalar_select %p225, %s224, 0
      %s227 = smul.addr %s226, 8
      %s228 = scalar_lea.vmem %s1, %s227
      %s229 = sadd.s32 %s18, %s19
      %p230 = scmp.lt.s32.totalorder %s229, 0
      %s231 = scalar_select %p230, %s229, 0
      %p232 = scmp.lt.s32.totalorder %s18, 1
      %s233 = scalar_select %p232, %s18, 1
      %s234 = scalar_lea.vmem %s3, %s233
      %v236 = vld [vmem:[%s228] sm:$0xff]
      %v237 = vld [vmem:[%s218] sm:$0xff]
      %v238 = vlaneseq
      %v239 = vand.u32 %v238, 127
      %240 = vset.pattern.permute.xlu0 0
      %241 = vperm.xlu0 %240, %v237
      %v242 = vpop.permute.xlu0 %241
      %vm243 = vcmp.eq.s32.totalorder %v239, %v242
      %v244 = vsel %vm243, 1, 0
      %v245 = vcvt.s32.f32 %v244
      %v246 = vpack.c.bf16 %v245, %v245
      %v247 = vld [vmem:[%s2] sm:$0xff]
      %v248 = vld [vmem:[%s2 + $0x8] sm:$0xff]
      %v249 = vpack.c.bf16 %v248, %v247
      %vm250 = vcmask 130048
      %v252 = vsel %vm250, %v246, 0
      %254 = vmatprep.subr.bf16.mxu0 0
      %255 = vmatpush1.bf16.msra.mxu0 0
      %256 = vmatprep.subr.bf16.mxu0 0
      %257 = vmatpush1.bf16.msra.mxu0 0
      %258 = vmatprep.subr.bf16.mxu0 0
      %259 = vmatpush1.bf16.msra.mxu0 0
      %260 = vmatprep.subr.bf16.mxu0 0
      %261 = vmatpush1.bf16.msra.mxu0 0
      %262 = vmatprep.subr.bf16.mxu0 0
      %263 = vmatpush1.bf16.msra.mxu0 0
      %264 = vmatprep.subr.bf16.mxu0 0
      %265 = vmatpush1.bf16.msra.mxu0 0
      %266 = vmatprep.subr.bf16.mxu0 0
      %267 = vmatpush1.bf16.msra.mxu0 0
      %268 = vmatprep.subr.bf16.mxu0 0
      %269 = vmatpush1.bf16.msra.mxu0 %v249
      %270 = vmatprep.subr.bf16.mxu0 0
      %271 = vmatpush2.bf16.msra.mxu0 0
      %272 = vmatprep.subr.bf16.mxu0 0
      %273 = vmatpush2.bf16.msra.mxu0 0
      %274 = vmatprep.subr.bf16.mxu0 0
      %275 = vmatpush2.bf16.msra.mxu0 0
      %276 = vmatprep.subr.bf16.mxu0 0
      %277 = vmatpush2.bf16.msra.mxu0 0
      %278 = vmatprep.subr.bf16.mxu0 0
      %279 = vmatpush2.bf16.msra.mxu0 0
      %280 = vmatprep.subr.bf16.mxu0 0
      %281 = vmatpush2.bf16.msra.mxu0 0
      %282 = vmatprep.subr.bf16.mxu0 0
      %283 = vmatpush2.bf16.msra.mxu0 0
      %284 = vmatprep.subr.bf16.mxu0 0
      %285 = vmatpush2.bf16.msra.mxu0 0
      %286 = vmatprep.mubr.bf16.mxu0 0
      %287 = vmatmul.mubr.bf16.gmra.mxu0 %v252
      %v288 = vpop.f32.mrf.mxu0
      %v289 = vadd.f32 0.0, %v288
      %v290 = vpop.f32.mrf.mxu0
      %v291 = vpop.f32.mrf.mxu0
      %v292 = vpop.f32.mrf.mxu0
      %293 = vdwg.mxu0
      %v294 = vmul.f32 %v236, %v289
      %v295 = vsub.f32 0.1, %v294
      %v296 = vmax.f32 %v295, 0.0
      %s297 = sadd.s32 %s18, %s19
      %s298 = smul.u32 %s297, 8
      %v299 = vlaneseq
      %v300 = vshrl.u32 %v299, 7
      %v301 = vstv %s298
      %v302 = vadd.s32 %v301, %v300
      %vm303 = vcmp.lt.s32.totalorder %v302, 8
      %v304 = vsel %vm303, %v296, 0.0
      %p305 = scmp.eq.s32.totalorder %s19, 0
      // Predicated region
      $region33: #{dpn_forward.1} parent=31 // pred_check
        %p306 = pneg %p305
      $region34: #{dpn_forward.1} parent=31 // pred_check_branch
        %308 = sbr.rel (%p306) target = $region36
      $region35: #{dpn_forward.1} parent=31 // pred_region
        %vm309 = vcmask 261120
        %310 = vst.msk [vmem:[#allocation2] sm:$0xff] %vm309, 0.0
        %vm311 = vcmask 0
        %312 = vst.msk [vmem:[%s234] sm:$0x1] %vm311, 0.0
      $region36: #{dpn_forward.1} parent=31 // pred_fallthru
        _
      %v313 = vld [vmem:[#allocation2] sm:$0xff]
      %v314 = vadd.f32 %v313, %v304
      %vm315 = vcmask 261120
      %316 = vst.msk [vmem:[#allocation2] sm:$0xff] %vm315, %v314
      // Predicated region
      $region37: #{dpn_forward.1} parent=31 // pred_check
        %p317 = pneg %p305
      $region38: #{dpn_forward.1} parent=31 // pred_check_branch
        %319 = sbr.rel (%p317) target = $region40
      $region39: #{dpn_forward.1} parent=31 // pred_region
        %v320 = vld [vmem:[#allocation2] sm:$0xff]
        %v321 = vsel %vm315, %v320, 0.0
        %322 = vadd.xlane.f32.xlu0 %v321
        %v323 = vpop.xlane.xlu0 %322
        %v324 = vrot.slane %v323, 4
        %v325 = vadd.f32 %v323, %v324
        %v326 = vrot.slane %v325, 2
        %v327 = vadd.f32 %v325, %v326
        %v328 = vrot.slane %v327, 1
        %v329 = vadd.f32 %v327, %v328
        %s330 = vtos %v329
        %v331 = vstv %s330
        %vm332 = vcmask 0
        %333 = vst.msk [vmem:[%s234] sm:$0x1] %vm332, %v331
      $region40: #{dpn_forward.1} parent=31 // pred_fallthru
        _
      %p334 = scmp.lt.s32.totalorder %s18, 1
      %s335 = scalar_select %p334, %s18, 1
      %s336 = scalar_lea.vmem %s3, %s335
      // Predicated region
      $region41: #{dpn_forward.1} parent=31 // pred_check
        %p337 = pneg %p129
      $region42: #{dpn_forward.1} parent=31 // pred_check_branch
        %339 = sbr.rel (%p337) target = $region44
      $region43: #{dpn_forward.1} parent=31 // pred_region
        _
      $region44: #{dpn_forward.1} parent=31 // pred_fallthru
        _
    $region32: #{dpn_forward.1} parent=5 // pred_fallthru
      _
    %p340 = scmp.le.s32.totalorder 2, %s9
    // Predicated region
    $region45: #{dpn_forward.1} parent=5 // pred_check
      %p341 = pneg %p340
    $region46: #{dpn_forward.1} parent=5 // pred_check_branch
      %343 = sbr.rel (%p341) target = $region48
    $region47: #{dpn_forward.1} parent=5 // pred_region
      %s344 = ssub.s32 %s9, 2
      // Predicated region
      $region49: #{dpn_forward.1} parent=47 // pred_check
        %p345 = pneg %p135
      $region50: #{dpn_forward.1} parent=47 // pred_check_branch
        %347 = sbr.rel (%p345) target = $region52
      $region51: #{dpn_forward.1} parent=47 // pred_region
        %p348 = scmp.lt.s32.totalorder %s20, 1
        %s349 = scalar_select %p348, %s20, 1
        %s350 = scalar_lea.vmem %s3, %s349
      $region52: #{dpn_forward.1} parent=47 // pred_fallthru
        _
    $region48: #{dpn_forward.1} parent=5 // pred_fallthru
      _
  $region6: #{dpn_forward.1} parent=0 // loop_footer
    %s13 = sadd.s32 1, %s9
  $region7: #{dpn_forward.1} parent=0 // loop_footer_branch
    %8 = sbr.rel target = $region3
  $region8: #{dpn_forward.1} parent=0 // loop_exit
    _

</llo_original>
